<compile_context>
chip_gen: v6e
topology: v6e:2x2x1
jax: 0.10.0
libtpu: 0.0.40
codegen_flags: <defaults>
</compile_context>

<pallas_src>
import functools

import jax
import jax.numpy as jnp
from jax.experimental import pallas as pl
from jax.experimental.pallas import tpu as pltpu

LN_EPS = 1e-12
_VMEM_FLOOR = 32 * 1024 * 1024
_VMEM_CAP = 48 * 1024 * 1024          # safely below v7x's 64 MiB physical VMEM


# ------------------------------ tiling helpers -------------------------------

def _pick_tile(dim, target, align):
    """Largest tile <= target that is a multiple of `align` and divides `dim`.

    Returns the full dim when it already fits; the full-dim fallback for
    awkward sizes is guarded (raises) instead of silently blowing VMEM.
    """
    if dim <= target:
        return dim
    t = (target // align) * align
    while t >= align:
        if dim % t == 0:
            return t
        t -= align
    if dim > 4 * target:
        raise ValueError(
            f"_pick_tile: no {align}-aligned tile <= {target} divides {dim}")
    return dim


def _vmem_limit(estimate_bytes):
    return int(min(max(int(estimate_bytes * 1.25), _VMEM_FLOOR), _VMEM_CAP))


# --------------------------- fused dense kernels ----------------------------

def _make_dense_kernel(act, has_res, fuse_ln):
    def kernel(*refs):
        x_ref, w_ref, b_ref = refs[0], refs[1], refs[2]
        idx = 3
        res_ref = None
        g_ref = beta_ref = None
        if has_res:
            res_ref = refs[idx]
            idx += 1
        if fuse_ln:
            g_ref, beta_ref = refs[idx], refs[idx + 1]
            idx += 2
        o_ref = refs[idx]
        acc_ref = refs[idx + 1]

        k = pl.program_id(2)

        @pl.when(k == 0)
        def _init():
            acc_ref[...] = jnp.zeros_like(acc_ref)

        acc_ref[...] += jnp.dot(x_ref[...], w_ref[...],
                                preferred_element_type=jnp.float32)

        @pl.when(k == pl.num_programs(2) - 1)
        def _finalize():
            y = acc_ref[...] + b_ref[...]                      # f32 epilogue
            if act == "gelu":
                # BERT gelu: x * 0.5 * (1 + erf(x / sqrt(2)))
                y = 0.5 * y * (1.0 + jax.lax.erf(y * 0.7071067811865476))
            elif act == "tanh":
                y = jnp.tanh(y)
            if has_res:
                y = y + res_ref[...].astype(jnp.float32)
            if fuse_ln:
                mu = jnp.mean(y, axis=-1, keepdims=True)
                var = jnp.mean(jnp.square(y - mu), axis=-1, keepdims=True)
                y = (y - mu) * jax.lax.rsqrt(var + LN_EPS)
                y = y * g_ref[...] + beta_ref[...]
            o_ref[...] = y.astype(o_ref.dtype)

    return kernel


def dense_fused(x, w, b, *, act="none", residual=None, gamma=None, beta=None,
                out_dtype=jnp.bfloat16, tm=512, tn=1024, tk=1024):
    """y = act(x @ w + b) [+ residual] [-> LayerNorm].

    x:[M,K], w:[K,N], b:[N]; MXU runs in bf16, accumulates in f32 in a VMEM
    scratch over the K grid axis; epilogue (bias/act/residual/LayerNorm) is
    fused into the last K step in f32.  If LayerNorm is fused, tn == N so that
    full rows are resident for the normalization.
    """
    M, K = x.shape
    N = w.shape[1]
    fuse_ln = gamma is not None
    has_res = residual is not None

    # fuse_ln forces full-row residency; keep tm modest when hidden is large
    # so the (tm, N) f32 accumulator + residual don't strain v7x's 64 MiB VMEM.
    tm_target = min(tm, 256) if (fuse_ln and N >= 2048) else tm
    tm = _pick_tile(M, tm_target, 16)             # 16: bf16 sublane packing
    tk = _pick_tile(K, tk, 128)
    tn = N if fuse_ln else _pick_tile(N, tn, 128)
    grid = (M // tm, N // tn, K // tk)

    x_bf = x.astype(jnp.bfloat16)
    w_bf = w.astype(jnp.bfloat16)
    out_bytes = jnp.dtype(out_dtype).itemsize

    in_specs = [
        pl.BlockSpec((tm, tk), lambda i, j, k: (i, k)),
        pl.BlockSpec((tk, tn), lambda i, j, k: (k, j)),
        pl.BlockSpec((1, tn), lambda i, j, k: (0, j)),
    ]
    args = [x_bf, w_bf, b.reshape(1, N).astype(jnp.float32)]
    if has_res:
        in_specs.append(pl.BlockSpec((tm, tn), lambda i, j, k: (i, j)))
        args.append(residual)
    if fuse_ln:
        in_specs.append(pl.BlockSpec((1, tn), lambda i, j, k: (0, j)))
        in_specs.append(pl.BlockSpec((1, tn), lambda i, j, k: (0, j)))
        args.append(gamma.reshape(1, N).astype(jnp.float32))
        args.append(beta.reshape(1, N).astype(jnp.float32))

    # Rough double-buffered footprint so we can raise the scoped VMEM limit on
    # v5e/v6e (bigger tiles, fewer K steps) without overshooting v7x.
    est = (2 * (tm * tk + tk * tn) * 2            # bf16 x / w tiles
           + tm * tn * 4                          # f32 accumulator scratch
           + 2 * tm * tn * out_bytes              # output tiles
           + (2 * tm * tn * 2 if has_res else 0)  # residual tiles (bf16)
           + 8 * tn * 4)                          # bias / gamma / beta rows

    return pl.pallas_call(
        _make_dense_kernel(act, has_res, fuse_ln),
        out_shape=jax.ShapeDtypeStruct((M, N), out_dtype),
        grid=grid,
        in_specs=in_specs,
        out_specs=pl.BlockSpec((tm, tn), lambda i, j, k: (i, j)),
        scratch_shapes=[pltpu.VMEM((tm, tn), jnp.float32)],
        compiler_params=pltpu.CompilerParams(
            dimension_semantics=("parallel", "parallel", "arbitrary"),
            vmem_limit_bytes=_vmem_limit(est)),
    )(*args)


# ----------------------------- fused FFN kernel ------------------------------

def _ffn_kernel(x_ref, wi_ref, bi_ref, wf_ref, bf_ref, g_ref, b_ref, o_ref):
    x = x_ref[...]                                              # (tm, H) bf16
    h = jnp.dot(x, wi_ref[...], preferred_element_type=jnp.float32)
    h = h + bi_ref[...]
    h = 0.5 * h * (1.0 + jax.lax.erf(h * 0.7071067811865476))   # BERT gelu
    y = jnp.dot(h.astype(jnp.bfloat16), wf_ref[...],
                preferred_element_type=jnp.float32)
    y = y + bf_ref[...] + x.astype(jnp.float32)                 # bias + residual
    mu = jnp.mean(y, axis=-1, keepdims=True)
    var = jnp.mean(jnp.square(y - mu), axis=-1, keepdims=True)
    y = (y - mu) * jax.lax.rsqrt(var + LN_EPS)
    o_ref[...] = (y * g_ref[...] + b_ref[...]).astype(o_ref.dtype)


def ffn_fused(x, wi, bi, wf, bf_, gamma, beta, *, tm=256):
    """LayerNorm(x + (gelu(x @ wi + bi) @ wf + bf)) — single kernel, the
    [M, intermediate] activation never touches HBM."""
    M, H = x.shape
    I = wi.shape[1]
    tm = _pick_tile(M, tm, 16)

    est = (2 * tm * H * 2 * 2            # x in + out (bf16, double-buffered)
           + 2 * (H * I + I * H) * 2     # wi + wf (bf16, buffer allocation)
           + tm * I * (4 + 2)            # intermediate f32 + bf16 cast
           + 2 * tm * H * 4              # f32 epilogue temps
           + 4 * (I + 3 * H) * 4)        # bias / gamma / beta rows
    if est > 40 * 1024 * 1024:
        # TODO(synk): for very large intermediate sizes, pipeline the
        # intermediate axis with pltpu.emit_pipeline instead of this fallback.
        inter = dense_fused(x, wi, bi, act="gelu")
        return dense_fused(inter, wf, bf_, residual=x, gamma=gamma, beta=beta)

    return pl.pallas_call(
        _ffn_kernel,
        out_shape=jax.ShapeDtypeStruct((M, H), jnp.bfloat16),
        grid=(M // tm,),
        in_specs=[
            pl.BlockSpec((tm, H), lambda i: (i, 0)),
            pl.BlockSpec((H, I), lambda i: (0, 0)),
            pl.BlockSpec((1, I), lambda i: (0, 0)),
            pl.BlockSpec((I, H), lambda i: (0, 0)),
            pl.BlockSpec((1, H), lambda i: (0, 0)),
            pl.BlockSpec((1, H), lambda i: (0, 0)),
            pl.BlockSpec((1, H), lambda i: (0, 0)),
        ],
        out_specs=pl.BlockSpec((tm, H), lambda i: (i, 0)),
        compiler_params=pltpu.CompilerParams(
            dimension_semantics=("parallel",),
            vmem_limit_bytes=_vmem_limit(est)),
    )(x.astype(jnp.bfloat16), wi.astype(jnp.bfloat16),
      bi.reshape(1, I).astype(jnp.float32), wf.astype(jnp.bfloat16),
      bf_.reshape(1, H).astype(jnp.float32),
      gamma.reshape(1, H).astype(jnp.float32),
      beta.reshape(1, H).astype(jnp.float32))


# ------------------------ embedding LayerNorm kernel -------------------------

def _emb_ln_kernel(emb_ref, ans_ref, g_ref, b_ref, o_ref):
    h = emb_ref[...].astype(jnp.float32)
    mu = jnp.mean(h, axis=-1, keepdims=True)
    var = jnp.mean(jnp.square(h - mu), axis=-1, keepdims=True)
    y = (h - mu) * jax.lax.rsqrt(var + LN_EPS) * g_ref[...] + b_ref[...]
    # answer embedding is added AFTER the embedding LayerNorm (as in reference)
    o_ref[...] = (y + ans_ref[...].astype(jnp.float32)).astype(o_ref.dtype)


def embed_layernorm(emb, ans, gamma, beta, *, tm=512):
    """LayerNorm(emb) * g + b + ans, over the last axis.  emb/ans: [M, H]."""
    M, H = emb.shape
    tm = _pick_tile(M, tm, 16)
    return pl.pallas_call(
        _emb_ln_kernel,
        out_shape=jax.ShapeDtypeStruct((M, H), jnp.bfloat16),
        grid=(M // tm,),
        in_specs=[
            pl.BlockSpec((tm, H), lambda i: (i, 0)),
            pl.BlockSpec((tm, H), lambda i: (i, 0)),
            pl.BlockSpec((1, H), lambda i: (0, 0)),
            pl.BlockSpec((1, H), lambda i: (0, 0)),
        ],
        out_specs=pl.BlockSpec((tm, H), lambda i: (i, 0)),
        compiler_params=pltpu.CompilerParams(
            dimension_semantics=("parallel",)),
    )(emb, ans, gamma.reshape(1, H).astype(jnp.float32),
      beta.reshape(1, H).astype(jnp.float32))


# ------------------------------ attention kernel -----------------------------

def _attn_kernel(q_ref, kv_ref, m_ref, o_ref, *, heads_per_group, head_dim,
                 scale):
    mask = m_ref[...].astype(jnp.float32)        # (1, S) — broadcasts over rows
    for j in range(heads_per_group):             # static unroll over heads
        base = j * 3 * head_dim
        # Slice refs directly: no full-tile materialisation, no ctx list,
        # no concatenate epilogue.  Scale is folded into q (S*dh muls, not S*S).
        q = q_ref[:, base:base + head_dim] * scale
        k = kv_ref[:, base + head_dim:base + 2 * head_dim]
        v = kv_ref[:, base + 2 * head_dim:base + 3 * head_dim]
        # scores = (q*scale) @ k^T without an explicit in-kernel transpose
        s = jax.lax.dot_general(q, k, (((1,), (1,)), ((), ())),
                                preferred_element_type=jnp.float32)
        s = s + mask                             # additive mask (mask='none')
        s = s - jnp.max(s, axis=-1, keepdims=True)
        p = jnp.exp(s)
        p = p * pl.reciprocal(jnp.sum(p, axis=-1, keepdims=True), approx=True)
        ctx = jnp.dot(p.astype(v.dtype), v, preferred_element_type=jnp.float32)
        # stream each head's context straight into its output column slice
        o_ref[:, j * head_dim:(j + 1) * head_dim] = ctx.astype(o_ref.dtype)


def _heads_per_group(num_heads, head_dim):
    """Smallest head-group size whose lane widths are multiples of 128 (else
    all heads, in which case the blocks span the full lane dims)."""
    for hpg in range(1, num_heads + 1):
        if num_heads % hpg == 0 and (head_dim * hpg) % 128 == 0:
            return hpg
    return num_heads


def attention(qkv, mask_add, *, num_heads, tq_target=256):
    """qkv: [B, S, 3H] with HEAD-INTERLEAVED columns [h0_q|h0_k|h0_v|h1_q|...];
    mask_add: [B, 1, S] additive mask.

    Grid = (batch, head_group, q_tile).  Each step reads a contiguous
    lane-dense q row-tile and the full-S K/V block of its head group (the K/V
    block index is constant across q tiles so it is not re-fetched), and writes
    the head-natural-order context slice [B, S, H].
    """
    B, S, H3 = qkv.shape
    H = H3 // 3
    dh = H // num_heads
    hpg = _heads_per_group(num_heads, dh)
    G = num_heads // hpg
    gw = 3 * dh * hpg                              # lane width of one group
    tq = _pick_tile(S, tq_target, 16)
    scale = 1.0 / float(dh) ** 0.5

    kernel = functools.partial(_attn_kernel, heads_per_group=hpg, head_dim=dh,
                               scale=scale)
    return pl.pallas_call(
        kernel,
        out_shape=jax.ShapeDtypeStruct((B, S, H), jnp.bfloat16),
        grid=(B, G, S // tq),
        in_specs=[
            pl.BlockSpec((None, tq, gw), lambda b, g, qi: (b, qi, g)),  # q rows
            pl.BlockSpec((None, S, gw), lambda b, g, qi: (b, 0, g)),    # k/v
            pl.BlockSpec((None, 1, S), lambda b, g, qi: (b, 0, 0)),     # mask
        ],
        out_specs=pl.BlockSpec((None, tq, hpg * dh), lambda b, g, qi: (b, qi, g)),
        compiler_params=pltpu.CompilerParams(
            dimension_semantics=("parallel", "parallel", "parallel")),
    )(qkv, qkv, mask_add)


# ----------------------------- parameter setup ------------------------------

def _interleave_qkv(wq, wk, wv, bq, bk, bv, num_heads):
    """Re-order [Wq | Wk | Wv] columns into per-head [h_q|h_k|h_v] groups so the
    attention kernel can take one contiguous lane slice per head group."""
    H = wq.shape[0]
    dh = wq.shape[1] // num_heads
    w = jnp.concatenate([wq.reshape(H, num_heads, dh),
                         wk.reshape(H, num_heads, dh),
                         wv.reshape(H, num_heads, dh)], axis=-1)
    b = jnp.concatenate([bq.reshape(num_heads, dh),
                         bk.reshape(num_heads, dh),
                         bv.reshape(num_heads, dh)], axis=-1)
    return w.reshape(H, 3 * num_heads * dh), b.reshape(3 * num_heads * dh)


def init_params(key, *, vocab, hidden, num_layers, num_heads, intermediate,
                max_pos, type_vocab=2, n_answers=20):
    std = 0.02
    keys = iter(jax.random.split(key, 8 + num_layers * 10))

    def nrm(shape):
        return (std * jax.random.normal(next(keys), shape)).astype(jnp.float32)

    def nrm_bf16(shape):
        return nrm(shape).astype(jnp.bfloat16)

    params = {
        "word_emb": nrm((vocab, hidden)),
        "pos_emb": nrm((max_pos, hidden)),
        "type_emb": nrm((type_vocab, hidden)),
        "ans_emb": nrm((n_answers, hidden)),
        "emb_ln_g": jnp.ones((hidden,), jnp.float32),
        "emb_ln_b": jnp.zeros((hidden,), jnp.float32),
        "num_heads": num_heads,
        "layers": [],
        "wp": nrm_bf16((hidden, hidden)),
        "bp": jnp.zeros((hidden,), jnp.float32),
    }
    for _ in range(num_layers):
        wq, wk, wv = nrm_bf16((hidden, hidden)), nrm_bf16((hidden, hidden)), \
            nrm_bf16((hidden, hidden))
        zb = jnp.zeros((hidden,), jnp.float32)
        wqkv, bqkv = _interleave_qkv(wq, wk, wv, zb, zb, zb, num_heads)
        params["layers"].append({
            # fused, head-interleaved Q|K|V projection weight [H, 3H]
            "wqkv": wqkv,
            "bqkv": bqkv,
            "wo": nrm_bf16((hidden, hidden)),
            "bo": jnp.zeros((hidden,), jnp.float32),
            "ln1_g": jnp.ones((hidden,), jnp.float32),
            "ln1_b": jnp.zeros((hidden,), jnp.float32),
            "wi": nrm_bf16((hidden, intermediate)),
            "bi": jnp.zeros((intermediate,), jnp.float32),
            "wf": nrm_bf16((intermediate, hidden)),
            "bf": jnp.zeros((hidden,), jnp.float32),
            "ln2_g": jnp.ones((hidden,), jnp.float32),
            "ln2_b": jnp.zeros((hidden,), jnp.float32),
        })
    return params


# ------------------------------- forward pass --------------------------------

def bert_forward(params, input_ids, token_type_ids=None, attention_mask=None,
                 answer_indicator=None, output_all_encoded_layers=True):
    B, S = input_ids.shape
    H = params["word_emb"].shape[1]
    NH = params["num_heads"]

    if attention_mask is None:
        attention_mask = jnp.ones_like(input_ids)
    if token_type_ids is None:
        token_type_ids = jnp.zeros_like(input_ids)
    if answer_indicator is None:
        answer_indicator = jnp.zeros_like(input_ids)

    # mask == 'none': mask_final = attention_mask[:, None, None, :] (float),
    # which the HF encoder ADDS to the scaled attention scores (raw 0/1 — this
    # faithfully mirrors the DiaBert mask='none' path).
    mask_add = attention_mask.astype(jnp.float32).reshape(B, 1, S)

    # Embeddings: gathers are glue (plain JAX); LayerNorm (+ answer-embedding
    # add) runs in a single fused Pallas kernel (no zeros-residual pass).
    pos_ids = jnp.arange(S, dtype=jnp.int32)
    emb = (jnp.take(params["word_emb"], input_ids, axis=0)
           + params["pos_emb"][pos_ids][None, :, :]
           + jnp.take(params["type_emb"], token_type_ids, axis=0))
    ans_emb = jnp.take(params["ans_emb"], answer_indicator, axis=0)
    hidden = embed_layernorm(emb.reshape(B * S, H),
                             ans_emb.reshape(B * S, H),
                             params["emb_ln_g"], params["emb_ln_b"])

    encoded_layers = []
    for layer in params["layers"]:
        # fused Q|K|V projection: one matmul, one HBM read of `hidden`
        qkv = dense_fused(hidden, layer["wqkv"], layer["bqkv"])
        ctx = attention(qkv.reshape(B, S, 3 * H), mask_add, num_heads=NH)
        ctx2 = ctx.reshape(B * S, H)
        # attention output projection fused with bias + residual + LayerNorm
        h1 = dense_fused(ctx2, layer["wo"], layer["bo"],
                         residual=hidden,
                         gamma=layer["ln1_g"], beta=layer["ln1_b"])
        # FFN: expand + GELU + contract + bias + residual + LayerNorm in one
        # kernel — the [M, intermediate] activation never round-trips HBM.
        hidden = ffn_fused(h1, layer["wi"], layer["bi"], layer["wf"],
                           layer["bf"], layer["ln2_g"], layer["ln2_b"])
        encoded_layers.append(hidden.reshape(B, S, H))

    sequence_output = encoded_layers[-1]
    # Pooler: M = batch rows only — a Pallas launch for a sub-8-sublane matmul
    # is pure overhead, so this tiny dense+tanh stays in plain XLA.
    seq0 = sequence_output[:, 0, :].astype(jnp.float32)
    pooled_output = jnp.tanh(seq0 @ params["wp"].astype(jnp.float32)
                             + params["bp"])
    if not output_all_encoded_layers:
        encoded_layers = encoded_layers[-1]
    return encoded_layers, pooled_output


# ---------------------------------- main -------------------------------------

if __name__ == "__main__":
    VOCAB, HIDDEN, LAYERS, HEADS, INTER, MAX_POS = 50, 32, 2, 4, 64, 16
    B, S = 2, 8

    params = init_params(jax.random.PRNGKey(0), vocab=VOCAB, hidden=HIDDEN,
                         num_layers=LAYERS, num_heads=HEADS,
                         intermediate=INTER, max_pos=MAX_POS)

    k1, k2 = jax.random.split(jax.random.PRNGKey(0))
    input_ids = jax.random.randint(k1, (B, S), 0, VOCAB, dtype=jnp.int32)
    token_type_ids = jnp.concatenate(
        [jnp.zeros((B, S // 2), jnp.int32), jnp.ones((B, S // 2), jnp.int32)],
        axis=1)
    attention_mask = jnp.ones((B, S), jnp.int32)
    answer_indicator = jax.random.randint(k2, (B, S), 0, 3, dtype=jnp.int32)

    encoded_layers, pooled = bert_forward(
        params, input_ids, token_type_ids, attention_mask, answer_indicator,
        output_all_encoded_layers=True)

    for e in encoded_layers:
        jax.block_until_ready(e)
    jax.block_until_ready(pooled)

    assert len(encoded_layers) == LAYERS
    assert encoded_layers[-1].shape == (B, S, HIDDEN)
    assert pooled.shape == (B, HIDDEN)
    assert bool(jnp.all(jnp.isfinite(encoded_layers[-1].astype(jnp.float32))))
    assert bool(jnp.all(jnp.isfinite(pooled)))
    print("KERNEL_OK")
</pallas_src>

<mosaic_0001>
module attributes {stable_mosaic.version = 11 : i64} {
  func.func @_emb_ln_kernel(%arg0: i32, %arg1: memref<16x32xf32, #tpu.memory_space<vmem>>, %arg2: memref<16x32xf32, #tpu.memory_space<vmem>>, %arg3: memref<1x32xf32, #tpu.memory_space<vmem>>, %arg4: memref<1x32xf32, #tpu.memory_space<vmem>>, %arg5: memref<16x32xbf16, #tpu.memory_space<vmem>>) attributes {dimension_semantics = [#tpu.dimension_semantics<parallel>], iteration_bounds = array<i64: 1>, scalar_prefetch = 0 : i64, scratch_operands = 0 : i64, tpu.core_type = #tpu.core_type<tc>, window_params = [{transform_indices = @transform_0, window_bounds = array<i64: 16, 32>}, {transform_indices = @transform_1, window_bounds = array<i64: 16, 32>}, {pipeline_mode = #tpu.pipeline_mode<synchronous>, transform_indices = @transform_2, window_bounds = array<i64: 1, 32>}, {pipeline_mode = #tpu.pipeline_mode<synchronous>, transform_indices = @transform_3, window_bounds = array<i64: 1, 32>}, {transform_indices = @transform_4, window_bounds = array<i64: 16, 32>}]} {
    %c0 = arith.constant 0 : index
    %c0_0 = arith.constant 0 : index
    %0 = vector.load %arg1[%c0, %c0_0] : memref<16x32xf32, #tpu.memory_space<vmem>>, vector<16x32xf32>
    %cst = arith.constant dense<0.000000e+00> : vector<16xf32>
    %1 = vector.multi_reduction <add>, %0, %cst [1] : vector<16x32xf32> to vector<16xf32>
    %2 = vector.shape_cast %1 : vector<16xf32> to vector<16x1xf32>
    %cst_1 = arith.constant 3.200000e+01 : f32
    %3 = vector.broadcast %cst_1 : f32 to vector<16x1xf32>
    %4 = arith.divf %2, %3 : vector<16x1xf32>
    %5 = vector.broadcast %4 : vector<16x1xf32> to vector<16x32xf32>
    %6 = arith.subf %0, %5 : vector<16x32xf32>
    %7 = arith.mulf %6, %6 : vector<16x32xf32>
    %cst_2 = arith.constant dense<0.000000e+00> : vector<16xf32>
    %8 = vector.multi_reduction <add>, %7, %cst_2 [1] : vector<16x32xf32> to vector<16xf32>
    %9 = vector.shape_cast %8 : vector<16xf32> to vector<16x1xf32>
    %cst_3 = arith.constant 3.200000e+01 : f32
    %10 = vector.broadcast %cst_3 : f32 to vector<16x1xf32>
    %11 = arith.divf %9, %10 : vector<16x1xf32>
    %12 = vector.broadcast %4 : vector<16x1xf32> to vector<16x32xf32>
    %13 = arith.subf %0, %12 : vector<16x32xf32>
    %cst_4 = arith.constant 9.99999996E-13 : f32
    %14 = vector.broadcast %cst_4 : f32 to vector<16x1xf32>
    %15 = arith.addf %11, %14 : vector<16x1xf32>
    %16 = math.rsqrt %15 : vector<16x1xf32>
    %17 = vector.broadcast %16 : vector<16x1xf32> to vector<16x32xf32>
    %18 = arith.mulf %13, %17 : vector<16x32xf32>
    %c0_5 = arith.constant 0 : index
    %c0_6 = arith.constant 0 : index
    %19 = vector.load %arg3[%c0_5, %c0_6] : memref<1x32xf32, #tpu.memory_space<vmem>>, vector<1x32xf32>
    %20 = vector.broadcast %19 : vector<1x32xf32> to vector<16x32xf32>
    %21 = arith.mulf %18, %20 : vector<16x32xf32>
    %c0_7 = arith.constant 0 : index
    %c0_8 = arith.constant 0 : index
    %22 = vector.load %arg4[%c0_7, %c0_8] : memref<1x32xf32, #tpu.memory_space<vmem>>, vector<1x32xf32>
    %23 = vector.broadcast %22 : vector<1x32xf32> to vector<16x32xf32>
    %24 = arith.addf %21, %23 : vector<16x32xf32>
    %c0_9 = arith.constant 0 : index
    %c0_10 = arith.constant 0 : index
    %25 = vector.load %arg2[%c0_9, %c0_10] : memref<16x32xf32, #tpu.memory_space<vmem>>, vector<16x32xf32>
    %26 = arith.addf %24, %25 : vector<16x32xf32>
    %27 = arith.truncf %26 : vector<16x32xf32> to vector<16x32xbf16>
    %c0_11 = arith.constant 0 : index
    %c0_12 = arith.constant 0 : index
    %28 = vector.load %arg5[%c0_11, %c0_12] : memref<16x32xbf16, #tpu.memory_space<vmem>>, vector<16x32xbf16>
    tpu.vector_store %arg5[%c0_11, %c0_12], %27 {strides = array<i32>} : memref<16x32xbf16, #tpu.memory_space<vmem>>, vector<16x32xbf16>,
    return
  }
  func.func @transform_0(%arg0: i32) -> (i32, i32) {
    %c0_i32 = arith.constant 0 : i32
    %c0_i32_0 = arith.constant 0 : i32
    return %arg0, %c0_i32 : i32, i32
  }
  func.func @transform_1(%arg0: i32) -> (i32, i32) {
    %c0_i32 = arith.constant 0 : i32
    %c0_i32_0 = arith.constant 0 : i32
    return %arg0, %c0_i32 : i32, i32
  }
  func.func @transform_2(%arg0: i32) -> (i32, i32) {
    %c0_i32 = arith.constant 0 : i32
    %c0_i32_0 = arith.constant 0 : i32
    %c0_i32_1 = arith.constant 0 : i32
    return %c0_i32, %c0_i32_0 : i32, i32
  }
  func.func @transform_3(%arg0: i32) -> (i32, i32) {
    %c0_i32 = arith.constant 0 : i32
    %c0_i32_0 = arith.constant 0 : i32
    %c0_i32_1 = arith.constant 0 : i32
    return %c0_i32, %c0_i32_0 : i32, i32
  }
  func.func @transform_4(%arg0: i32) -> (i32, i32) {
    %c0_i32 = arith.constant 0 : i32
    %c0_i32_0 = arith.constant 0 : i32
    return %arg0, %c0_i32 : i32, i32
  }
}

</mosaic_0001>

<llo_original>
// kernel: tpu_custom_call.1
$region0: #{tpu_custom_call.1}
  #allocation0 [shape = 'u32[]', space=smem, size = 0x4, offset = 0x4, fixed_abs, tag = 'smem constant byte address 0x4 - core index']
  #allocation1 [shape = 'u32[144,128]{1,0:T(1,128)}', space=vmem, size = 0x12000, scoped, tag = 'internal scratch']
  %s0 = inlined_call_operand.hbm [shape: f32[16,32], index: 0, kind: input, shape index: {}]
  %s1 = inlined_call_operand.hbm [shape: f32[16,32], index: 1, kind: input, shape index: {}]
  %s2 = inlined_call_operand.vmem [shape: f32[1,32], index: 2, kind: input, shape index: {}]
  %s3 = inlined_call_operand.vmem [shape: f32[1,32], index: 3, kind: input, shape index: {}]
  %s4 = inlined_call_operand.hbm [shape: bf16[16,32], index: 4, kind: output, shape index: {}]
  %s5 = sld [smem:[#allocation0]]
  $region34: #{tpu_custom_call.1} parent=0
    _
  %s7 = ssub.s32 1, %s5
  %s8 = scalar_select 0, %s7, %s5
  $region1: #{tpu_custom_call.1} parent=0
    #allocation2 [shape = 'u8[8192]{0}', space=vmem, size = 0x2000, scoped, tag = 'input window, operand 0, single buffered']
    #allocation3 [shape = 's32[1]{0}', space=sflag, size = 0x4, scoped, tag = 'scoped memory for tpu_custom_call.1']
    #allocation4 [shape = 's32[1]{0}', space=sflag, size = 0x4, scoped, tag = 'scoped memory for tpu_custom_call.1']
    #allocation5 [shape = 'u8[8192]{0}', space=vmem, size = 0x2000, scoped, tag = 'input window, operand 1, single buffered']
    #allocation6 [shape = 's32[1]{0}', space=sflag, size = 0x4, scoped, tag = 'scoped memory for tpu_custom_call.1']
    #allocation7 [shape = 'u8[4096]{0}', space=vmem, size = 0x1000, scoped, tag = 'output window, operand 0, single buffered']
    %9 = vsyncpa [#allocation3], 0
    %10 = vsyncpa [#allocation6], 0
    %11 = vsyncpa [#allocation4], 0
    // Predicated region
    $region2: #{tpu_custom_call.1} parent=1 // pred_check
      _
    $region3: #{tpu_custom_call.1} parent=1 // pred_check_branch
      %13 = sbr.rel (0) target = $region5
    $region4: #{tpu_custom_call.1} parent=1 // pred_region
      %s15 = ssub.s32 256, 256
      %16 = vsyncadd [#allocation3], %s15
      %s17 = sshll.u32 [#allocation2], 4
      %s18 = int_to_ptr.vmem [resolvable:$true] %s17
      %23 = dma.hbm_to_vmem [thread:$0]  %s0, 256, %s18, [#allocation3], 128, 128, 8
    $region5: #{tpu_custom_call.1} parent=1 // pred_fallthru
      _
    // Predicated region
    $region6: #{tpu_custom_call.1} parent=1 // pred_check
      _
    $region7: #{tpu_custom_call.1} parent=1 // pred_check_branch
      %25 = sbr.rel (0) target = $region9
    $region8: #{tpu_custom_call.1} parent=1 // pred_region
      %s27 = ssub.s32 256, 256
      %28 = vsyncadd [#allocation6], %s27
      %s29 = sshll.u32 [#allocation5], 4
      %s30 = int_to_ptr.vmem [resolvable:$true] %s29
      %35 = dma.hbm_to_vmem [thread:$0]  %s1, 256, %s30, [#allocation6], 128, 128, 8
    $region9: #{tpu_custom_call.1} parent=1 // pred_fallthru
      _
    // Predicated region
    $region10: #{tpu_custom_call.1} parent=1 // pred_check
      _
    $region11: #{tpu_custom_call.1} parent=1 // pred_check_branch
      %37 = sbr.rel (0) target = $region13
    $region12: #{tpu_custom_call.1} parent=1 // pred_region
      _
    $region13: #{tpu_custom_call.1} parent=1 // pred_fallthru
      _
    // Predicated region
    $region14: #{tpu_custom_call.1} parent=1 // pred_check
      _
    $region15: #{tpu_custom_call.1} parent=1 // pred_check_branch
      %39 = sbr.rel (0) target = $region17
    $region16: #{tpu_custom_call.1} parent=1 // pred_region
      _
    $region17: #{tpu_custom_call.1} parent=1 // pred_fallthru
      _
    // Predicated region
    $region18: #{tpu_custom_call.1} parent=1 // pred_check
      _
    $region19: #{tpu_custom_call.1} parent=1 // pred_check_branch
      %41 = sbr.rel (0) target = $region21
    $region20: #{tpu_custom_call.1} parent=1 // pred_region
      %42 = dma.done [#allocation3], 256
    $region21: #{tpu_custom_call.1} parent=1 // pred_fallthru
      _
    // Predicated region
    $region22: #{tpu_custom_call.1} parent=1 // pred_check
      _
    $region23: #{tpu_custom_call.1} parent=1 // pred_check_branch
      %44 = sbr.rel (0) target = $region25
    $region24: #{tpu_custom_call.1} parent=1 // pred_region
      %45 = dma.done [#allocation6], 256
    $region25: #{tpu_custom_call.1} parent=1 // pred_fallthru
      _
    %v46 = vld [vmem:[#allocation2] sm:$0xff]
    %v47 = vld [vmem:[#allocation2 + $0x8] sm:$0xff]
    %vm48 = vcmask 261120
    %v49 = vsel %vm48, %v46, 0.0
    %50 = vadd.xlane.f32.xlu0 %v49
    %v51 = vpop.xlane.xlu0 %50
    %v52 = vsel %vm48, %v47, 0.0
    %53 = vadd.xlane.f32.xlu0 %v52
    %v54 = vpop.xlane.xlu0 %53
    %v55 = vrcp.pop 32.0
    %v56 = vmul.f32 %v51, %v55
    %v57 = vmul.f32 %v54, %v55
    %v58 = vsub.f32 %v46, %v56
    %v59 = vsub.f32 %v47, %v57
    %v60 = vmul.f32 %v58, %v58
    %v61 = vmul.f32 %v59, %v59
    %v62 = vsel %vm48, %v60, 0.0
    %63 = vadd.xlane.f32.xlu0 %v62
    %v64 = vpop.xlane.xlu0 %63
    %v65 = vsel %vm48, %v61, 0.0
    %66 = vadd.xlane.f32.xlu0 %v65
    %v67 = vpop.xlane.xlu0 %66
    %v68 = vmul.f32 %v64, %v55
    %v69 = vmul.f32 %v67, %v55
    %v70 = vadd.f32 %v68, 1e-12
    %v71 = vadd.f32 %v69, 1e-12
    %v72 = vrsqrt.pop %v70
    %v73 = vrsqrt.pop %v71
    %v74 = vmul.f32 %v58, %v72
    %v75 = vmul.f32 %v59, %v73
    %v76 = vld [vmem:[%s2] sm:$0x1]
    %v78 = vlaneseq
    %v79 = vshrl.u32 %v78, 7
    %v80 = vsub.s32 0, %v79
    %v81 = vrot.slane %v76, %v80
    %v83 = vmul.f32 %v74, %v81
    %v84 = vmul.f32 %v75, %v81
    %v85 = vld [vmem:[%s3] sm:$0x1]
    %v87 = vlaneseq
    %v88 = vshrl.u32 %v87, 7
    %v89 = vsub.s32 0, %v88
    %v90 = vrot.slane %v85, %v89
    %v92 = vadd.f32 %v83, %v90
    %v93 = vadd.f32 %v84, %v90
    %v94 = vld [vmem:[#allocation5] sm:$0xff]
    %v95 = vld [vmem:[#allocation5 + $0x8] sm:$0xff]
    %v96 = vadd.f32 %v92, %v94
    %v97 = vadd.f32 %v93, %v95
    %v98 = vpack.c.bf16 %v97, %v96
    %v100 = vunpack.c.l.b16 %v98
    %v101 = vunpack.c.h.b16 %v98
    %v102 = vpack.c.b16 %v100, %v100
    %v103 = vpack.c.b16 %v101, %v101
    %vm106 = vcmask 257024
    %107 = vst.msk [vmem:[#allocation7] sm:$0xf] %vm106, %v102
    %108 = vst.msk [vmem:[#allocation7 + $0x4] sm:$0xf] %vm106, %v103
    // Predicated region
    $region26: #{tpu_custom_call.1} parent=1 // pred_check
      _
    $region27: #{tpu_custom_call.1} parent=1 // pred_check_branch
      %110 = sbr.rel (0) target = $region29
    $region28: #{tpu_custom_call.1} parent=1 // pred_region
      %s112 = ssub.s32 128, 128
      %113 = vsyncadd [#allocation4], %s112
      %s114 = sshll.u32 [#allocation7], 4
      %s115 = int_to_ptr.vmem [resolvable:$true] %s114
      %120 = dma.vmem_to_hbm [thread:$0]  %s115, 128, %s4, [#allocation4], 64, 64, 4
    $region29: #{tpu_custom_call.1} parent=1 // pred_fallthru
      _
    // Predicated region
    $region30: #{tpu_custom_call.1} parent=1 // pred_check
      _
    $region31: #{tpu_custom_call.1} parent=1 // pred_check_branch
      %122 = sbr.rel (0) target = $region33
    $region32: #{tpu_custom_call.1} parent=1 // pred_region
      %123 = dma.done [#allocation4], 128
    $region33: #{tpu_custom_call.1} parent=1 // pred_fallthru
      _
    %124 = vsyncpa [#allocation3], 1
    %125 = vsyncpa [#allocation6], 1
    %126 = vsyncpa [#allocation4], 1

</llo_original>
